<compile_context>
chip_gen: v7x
topology: tpu7x:2x2x1
jax: 0.10.0
libtpu: 0.0.40
codegen_flags: <defaults>
</compile_context>

<pallas_src>
import jax
import jax.numpy as jnp
from jax import lax
from jax.experimental import pallas as pl
from jax.experimental.pallas import tpu as pltpu


def _round_up(x, m):
    return ((x + m - 1) // m) * m


# ---------------------------------------------------------------------------
# Path A: VMEM-resident table + one-hot matmul gather.
# ---------------------------------------------------------------------------
def _resident_table_kernel(ids_ref, emb_ref, out_ref):
    # ids_ref: (1, TB, 1) int32 token ids for this block.
    # emb_ref: (V, D) full embedding table (fetched to VMEM once).
    # out_ref: (TB, D) output tile.
    V = emb_ref.shape[0]
    TB = out_ref.shape[0]
    ids = ids_ref[0]                                           # (TB, 1)
    cols = lax.broadcasted_iota(jnp.int32, (TB, V), 1)         # (TB, V)
    onehot = (ids == cols).astype(emb_ref.dtype)               # (TB, V), exact 0/1
    out_ref[...] = jnp.dot(
        onehot, emb_ref[...], preferred_element_type=jnp.float32
    ).astype(out_ref.dtype)


def _lookup_resident(embeddings, ids_pad, tb):
    V, D = embeddings.shape
    n_pad = ids_pad.shape[0]
    g = n_pad // tb
    ids3 = ids_pad.reshape(g, tb, 1)
    itemsize = embeddings.dtype.itemsize
    cost = pl.CostEstimate(
        flops=2 * n_pad * V * D,
        transcendentals=0,
        bytes_accessed=V * D * itemsize + n_pad * (D * itemsize + 4) + n_pad * D * itemsize,
    )
    return pl.pallas_call(
        _resident_table_kernel,
        out_shape=jax.ShapeDtypeStruct((n_pad, D), embeddings.dtype),
        grid_spec=pltpu.PrefetchScalarGridSpec(
            num_scalar_prefetch=0,
            grid=(g,),
            in_specs=[
                pl.BlockSpec((1, tb, 1), lambda i: (i, 0, 0)),   # token-id block
                pl.BlockSpec((V, D), lambda i: (0, 0)),          # whole table, constant
            ],
            out_specs=pl.BlockSpec((tb, D), lambda i: (i, 0)),
        ),
        compiler_params=pltpu.CompilerParams(dimension_semantics=("parallel",)),
        cost_estimate=cost,
    )(ids3, embeddings)


# ---------------------------------------------------------------------------
# Path B: manual batched row-gather DMAs from HBM.
# ---------------------------------------------------------------------------
def _make_dma_gather_kernel(tb):
    def kernel(ids_ref, emb_hbm, out_ref, scratch, sems):
        # ids_ref : (N_pad,) int32 in SMEM (scalar-prefetched).
        # emb_hbm : (V, D) raw HBM ref (memory_space=pl.ANY).
        # out_ref : (tb, D) VMEM output tile.
        # scratch : (tb, D) VMEM gather buffer; sems: tb DMA semaphores.
        i = pl.program_id(0)
        base = i * tb
        copies = []
        for t in range(tb):                       # static unroll: tb DMAs in flight
            row = ids_ref[base + t]
            cp = pltpu.make_async_copy(
                emb_hbm.at[pl.ds(row, 1), :],
                scratch.at[pl.ds(t, 1), :],
                sems.at[t],
            )
            cp.start()
            copies.append(cp)
        for cp in copies:
            cp.wait()
        out_ref[...] = scratch[...]               # single dense (tb, D) store
    return kernel


def _lookup_dma(embeddings, ids_pad, tb):
    V, D = embeddings.shape
    n_pad = ids_pad.shape[0]
    g = n_pad // tb
    itemsize = embeddings.dtype.itemsize
    cost = pl.CostEstimate(
        flops=0,
        transcendentals=0,
        bytes_accessed=2 * n_pad * D * itemsize + n_pad * 4,
    )
    return pl.pallas_call(
        _make_dma_gather_kernel(tb),
        out_shape=jax.ShapeDtypeStruct((n_pad, D), embeddings.dtype),
        grid_spec=pltpu.PrefetchScalarGridSpec(
            num_scalar_prefetch=1,                 # flat ids -> SMEM
            grid=(g,),
            in_specs=[pl.BlockSpec(memory_space=pl.ANY)],   # table stays in HBM
            out_specs=pl.BlockSpec((tb, D), lambda i, ids: (i, 0)),
            scratch_shapes=[
                pltpu.VMEM((tb, D), embeddings.dtype),
                pltpu.SemaphoreType.DMA((tb,)),
            ],
        ),
        compiler_params=pltpu.CompilerParams(dimension_semantics=("parallel",)),
        cost_estimate=cost,
    )(ids_pad, embeddings)


# ---------------------------------------------------------------------------
# Public wrapper: Pallas equivalent of `self.embeddings[token_ids]`.
# ---------------------------------------------------------------------------
def uniform_embedding_lookup(
    embeddings,
    token_ids,
    *,
    block_tokens=None,
    vmem_table_budget_bytes=8 * 1024 * 1024,   # conservative: fits v7x's 64 MiB VMEM
    force_path=None,
):
    """embeddings: (V, D); token_ids: any int shape, values in [0, V).
    Returns token_ids.shape + (D,) of embeddings.dtype."""
    V, D = embeddings.shape
    flat_ids = jnp.clip(
        jnp.asarray(token_ids).reshape(-1).astype(jnp.int32), 0, V - 1
    )
    N = flat_ids.shape[0]

    table_bytes = V * D * embeddings.dtype.itemsize
    path = force_path or (
        "resident" if table_bytes <= vmem_table_budget_bytes else "dma"
    )

    if block_tokens is None:
        # Bigger blocks for the resident (matmul) path, moderate DMA fan-out for
        # the HBM-gather path (32-128 per the roofline: latency-bound row DMAs).
        tb = 128 if path == "resident" else 32
        tb = min(tb, _round_up(N, 8))
    else:
        tb = block_tokens
    tb = max(8, _round_up(tb, 8))                 # sublane-dense output blocks

    n_pad = _round_up(N, tb)
    if n_pad != N:
        flat_ids = jnp.concatenate(
            [flat_ids, jnp.zeros((n_pad - N,), jnp.int32)]
        )

    if path == "resident":
        out = _lookup_resident(embeddings, flat_ids, tb)
    else:
        out = _lookup_dma(embeddings, flat_ids, tb)

    return out[:N].reshape(tuple(token_ids.shape) + (D,))


def init_uniform_embedding_space(key, vocab_size, embedding_dim, dtype=jnp.float32):
    """Mirrors the PyTorch __init__: randn(V, D) L2-normalized along dim=1.
    (For a purely bandwidth-bound gather, storing the table in bf16 halves HBM
    traffic; kept f32 here to match the nn.Parameter semantics exactly.)"""
    emb = jax.random.normal(key, (vocab_size, embedding_dim), dtype=dtype)
    emb = emb / jnp.linalg.norm(emb, axis=1, keepdims=True)
    return emb


if __name__ == "__main__":
    # Small, module-consistent shapes (D a multiple of 128 for lane alignment).
    vocab_size = 64
    embedding_dim = 256
    batch, seq = 2, 8

    key = jax.random.PRNGKey(0)
    k_emb, k_ids = jax.random.split(key)

    embeddings = init_uniform_embedding_space(k_emb, vocab_size, embedding_dim)
    token_ids = jax.random.randint(k_ids, (batch, seq), 0, vocab_size, dtype=jnp.int32)

    ref = embeddings[token_ids]

    # Path A: VMEM-resident table (auto-selected for this small vocab).
    out_a = uniform_embedding_lookup(
        embeddings, token_ids, block_tokens=8, force_path="resident"
    )
    out_a = jax.block_until_ready(out_a)
    assert out_a.shape == (batch, seq, embedding_dim)
    assert jnp.allclose(out_a, ref), "resident-table gather mismatch vs reference"

    # Path B: batched HBM row-gather DMAs (the large-vocab path).
    out_b = uniform_embedding_lookup(
        embeddings, token_ids, block_tokens=8, force_path="dma"
    )
    out_b = jax.block_until_ready(out_b)
    assert out_b.shape == (batch, seq, embedding_dim)
    assert jnp.allclose(out_b, ref), "DMA gather mismatch vs reference"

    print("KERNEL_OK")
</pallas_src>

<mosaic_0001>
module attributes {stable_mosaic.version = 11 : i64} {
  func.func @_resident_table_kernel(%arg0: i32, %arg1: memref<1x8x1xi32, #tpu.memory_space<vmem>>, %arg2: memref<64x256xf32, #tpu.memory_space<vmem>>, %arg3: memref<8x256xf32, #tpu.memory_space<vmem>>) attributes {dimension_semantics = [#tpu.dimension_semantics<parallel>], iteration_bounds = array<i64: 2>, scalar_prefetch = 0 : i64, scratch_operands = 0 : i64, tpu.core_type = #tpu.core_type<tc>, window_params = [{transform_indices = @transform_0, window_bounds = array<i64: 1, 8, 1>}, {pipeline_mode = #tpu.pipeline_mode<synchronous>, transform_indices = @transform_1, window_bounds = array<i64: 64, 256>}, {transform_indices = @transform_2, window_bounds = array<i64: 8, 256>}]} {
    %c0 = arith.constant 0 : index
    %c0_0 = arith.constant 0 : index
    %c0_1 = arith.constant 0 : index
    %0 = vector.load %arg1[%c0, %c0_0, %c0_1] : memref<1x8x1xi32, #tpu.memory_space<vmem>>, vector<1x8x1xi32>
    %1 = vector.shape_cast %0 : vector<1x8x1xi32> to vector<8x1xi32>
    %2 = tpu.iota {dimensions = array<i32: 1>} : vector<8x64xi32>
    %3 = vector.broadcast %1 : vector<8x1xi32> to vector<8x64xi32>
    %4 = arith.cmpi eq, %3, %2 : vector<8x64xi32>
    %5 = arith.extui %4 : vector<8x64xi1> to vector<8x64xi32>
    %6 = arith.sitofp %5 : vector<8x64xi32> to vector<8x64xf32>
    %c0_2 = arith.constant 0 : index
    %c0_3 = arith.constant 0 : index
    %7 = vector.load %arg2[%c0_2, %c0_3] : memref<64x256xf32, #tpu.memory_space<vmem>>, vector<64x256xf32>
    %cst = arith.constant dense<0.000000e+00> : vector<8x256xf32>
    %8 = tpu.matmul %6, %7, %cst {dimension_numbers = #tpu.dot_dimension_numbers<[1], [0], [0], [1], [0, 0, 1, 1], [], []>} : vector<8x64xf32>, vector<64x256xf32>, vector<8x256xf32> -> vector<8x256xf32>
    %c0_4 = arith.constant 0 : index
    %c0_5 = arith.constant 0 : index
    %9 = vector.load %arg3[%c0_4, %c0_5] : memref<8x256xf32, #tpu.memory_space<vmem>>, vector<8x256xf32>
    tpu.vector_store %arg3[%c0_4, %c0_5], %8 {strides = array<i32>} : memref<8x256xf32, #tpu.memory_space<vmem>>, vector<8x256xf32>,
    return
  }
  func.func @transform_0(%arg0: i32) -> (i32, i32, i32) {
    %c0_i32 = arith.constant 0 : i32
    %c0_i32_0 = arith.constant 0 : i32
    %c0_i32_1 = arith.constant 0 : i32
    return %arg0, %c0_i32, %c0_i32_0 : i32, i32, i32
  }
  func.func @transform_1(%arg0: i32) -> (i32, i32) {
    %c0_i32 = arith.constant 0 : i32
    %c0_i32_0 = arith.constant 0 : i32
    %c0_i32_1 = arith.constant 0 : i32
    return %c0_i32, %c0_i32_0 : i32, i32
  }
  func.func @transform_2(%arg0: i32) -> (i32, i32) {
    %c0_i32 = arith.constant 0 : i32
    %c0_i32_0 = arith.constant 0 : i32
    return %arg0, %c0_i32 : i32, i32
  }
}

</mosaic_0001>

<llo_original>
// kernel: tpu_custom_call.1
$region0: #{tpu_custom_call.1}
  #allocation0 [shape = 'u32[]', space=smem, size = 0x4, offset = 0x4, fixed_abs, tag = 'smem constant byte address 0x4 - core index']
  #allocation1 [shape = 'u32[144,128]{1,0:T(1,128)}', space=vmem, size = 0x12000, scoped, tag = 'internal scratch']
  %s0 = inlined_call_operand.vmem [shape: s32[2,8,1], index: 0, kind: input, shape index: {}]
  %s1 = inlined_call_operand.hbm [shape: f32[64,256], index: 1, kind: input, shape index: {}]
  %s2 = inlined_call_operand.hbm [shape: f32[16,256], index: 2, kind: output, shape index: {}]
  %s3 = sld [smem:[#allocation0]]
  $region45: #{tpu_custom_call.1} parent=0
    _
  %s5 = ssub.s32 1, %s3
  %s6 = scalar_select 0, %s5, %s3
  $region1: #{tpu_custom_call.1} parent=0
    #allocation2 [shape = 'u8[65536]{0}', space=vmem, size = 0x10000, scoped, tag = 'input window, operand 1, single buffered']
    #allocation3 [shape = 's32[2]{0}', space=sflag, size = 0x8, scoped, tag = 'scoped memory for tpu_custom_call.1']
    #allocation4 [shape = 's32[2]{0}', space=sflag, size = 0x8, scoped, tag = 'scoped memory for tpu_custom_call.1']
    #allocation5 [shape = 'u8[16384]{0}', space=vmem, size = 0x4000, scoped, tag = 'output window, operand 0']
    %7 = vsyncpa [#allocation3], 0
    %8 = vsyncpa [#allocation4], 0
    %s9 = scalar_lea.sflag [#allocation4], 1
    %10 = vsyncpa %s9, 0
    loop: start=0, step=1, limit=4
    $region2: #{tpu_custom_call.1} parent=1 // loop_pre_header
      _
    $region3: #{tpu_custom_call.1} parent=1 // loop_header
      %s12 = sphi 0, %s16
      %p13 = scmp.ge.s32.totalorder %s12, 4
      %s22 = sphi 0, %s24
      %s25 = sphi 0, %s22
      %s26 = sphi 0, %s25
      %s42 = sphi 0, %s26
      %s46 = sphi 0, %s46
      %s48 = sphi 0, %s46
      %s49 = sphi 0, %s48
      %s63 = sphi 0, %s49
      %s69 = sphi 0, %s71
      %s72 = sphi 0, %s69
      %s73 = sphi 0, %s72
      %s89 = sphi 0, %s73
    $region4: #{tpu_custom_call.1} parent=1 // loop_header_branch
      %15 = sbr.rel (%p13) target = $region8
    $region5: #{tpu_custom_call.1} parent=1 // loop_body
      %s17 = ssub.s32 %s12, 1
      %s18 = ssub.s32 %s12, 2
      %s19 = sadd.s32 %s12, 1
      %s20 = ssub.s32 %s12, %s19
      %p21 = scmp.eq.s32.totalorder %s20, 0
      %s23 = sadd.s32 %s22, 1
      %s24 = scalar_select %p21, %s22, %s23
      %p27 = pneg %p21
      %p28 = scmp.eq.s32.totalorder %s12, 1
      %p29 = por %p27, %p28
      %p30 = scmp.ne.s32.totalorder %s22, %s25
      %p31 = scmp.eq.s32.totalorder %s12, 0
      %p32 = por %p30, %p31
      %p33 = scmp.ne.s32.totalorder %s22, %s25
      %p34 = scmp.eq.s32.totalorder %s17, 1
      %p35 = por %p33, %p34
      %p36 = scmp.ne.s32.totalorder %s25, %s26
      %p37 = scmp.eq.s32.totalorder %s17, 0
      %p38 = por %p36, %p37
      %p39 = scmp.ne.s32.totalorder %s25, %s26
      %p40 = scmp.eq.s32.totalorder %s18, 1
      %p41 = por %p39, %p40
      %p43 = scmp.ne.s32.totalorder %s26, %s42
      %p44 = scmp.eq.s32.totalorder %s18, 0
      %p45 = por %p43, %p44
      %s47 = sadd.s32 %s46, 1
      %p50 = scmp.eq.s32.totalorder %s12, 1
      %p51 = scmp.ne.s32.totalorder %s46, %s48
      %p52 = scmp.eq.s32.totalorder %s12, 0
      %p53 = por %p51, %p52
      %p54 = scmp.ne.s32.totalorder %s46, %s48
      %p55 = scmp.eq.s32.totalorder %s17, 1
      %p56 = por %p54, %p55
      %p57 = scmp.ne.s32.totalorder %s48, %s49
      %p58 = scmp.eq.s32.totalorder %s17, 0
      %p59 = por %p57, %p58
      %p60 = scmp.ne.s32.totalorder %s48, %s49
      %p61 = scmp.eq.s32.totalorder %s18, 1
      %p62 = por %p60, %p61
      %p64 = scmp.ne.s32.totalorder %s49, %s63
      %p65 = scmp.eq.s32.totalorder %s18, 0
      %p66 = por %p64, %p65
      %s67 = ssub.s32 %s12, %s19
      %p68 = scmp.eq.s32.totalorder %s67, 0
      %s70 = sadd.s32 %s69, 1
      %s71 = scalar_select %p68, %s69, %s70
      %p74 = pneg %p68
      %p75 = scmp.eq.s32.totalorder %s12, 1
      %p76 = por %p74, %p75
      %p77 = scmp.ne.s32.totalorder %s69, %s72
      %p78 = scmp.eq.s32.totalorder %s12, 0
      %p79 = por %p77, %p78
      %p80 = scmp.ne.s32.totalorder %s69, %s72
      %p81 = scmp.eq.s32.totalorder %s17, 1
      %p82 = por %p80, %p81
      %p83 = scmp.ne.s32.totalorder %s72, %s73
      %p84 = scmp.eq.s32.totalorder %s17, 0
      %p85 = por %p83, %p84
      %p86 = scmp.ne.s32.totalorder %s72, %s73
      %p87 = scmp.eq.s32.totalorder %s18, 1
      %p88 = por %p86, %p87
      %p90 = scmp.ne.s32.totalorder %s73, %s89
      %p91 = scmp.eq.s32.totalorder %s18, 0
      %p92 = por %p90, %p91
      %p93 = scmp.le.s32.totalorder 1, %s12
      %p94 = scmp.lt.s32.totalorder %s12, 3
      %p95 = pnand %p93, %p94
      %p96 = pneg %p95
      // Predicated region
      $region9: #{tpu_custom_call.1} parent=5 // pred_check
        _
      $region10: #{tpu_custom_call.1} parent=5 // pred_check_branch
        %98 = sbr.rel (%p95) target = $region12
      $region11: #{tpu_custom_call.1} parent=5 // pred_region
        %s99 = ssub.s32 %s12, 1
        // Predicated region
        $region13: #{tpu_custom_call.1} parent=11 // pred_check
          %p100 = pneg %p59
        $region14: #{tpu_custom_call.1} parent=11 // pred_check_branch
          %102 = sbr.rel (%p100) target = $region16
        $region15: #{tpu_custom_call.1} parent=11 // pred_region
          %s104 = ssub.s32 2048, 2048
          %105 = vsyncadd [#allocation3], %s104
          %s106 = sshll.u32 [#allocation2], 4
          %s107 = int_to_ptr.vmem [resolvable:$true] %s106
          %112 = dma.hbm_to_vmem [thread:$0]  %s1, 2048, %s107, [#allocation3], 256, 256, 16
        $region16: #{tpu_custom_call.1} parent=11 // pred_fallthru
          _
      $region12: #{tpu_custom_call.1} parent=5 // pred_fallthru
        _
      %p113 = scmp.lt.s32.totalorder %s12, 2
      // Predicated region
      $region17: #{tpu_custom_call.1} parent=5 // pred_check
        %p114 = pneg %p113
      $region18: #{tpu_custom_call.1} parent=5 // pred_check_branch
        %116 = sbr.rel (%p114) target = $region20
      $region19: #{tpu_custom_call.1} parent=5 // pred_region
        // Predicated region
        $region21: #{tpu_custom_call.1} parent=19 // pred_check
          %p117 = pneg %p32
        $region22: #{tpu_custom_call.1} parent=19 // pred_check_branch
          %119 = sbr.rel (%p117) target = $region24
        $region23: #{tpu_custom_call.1} parent=19 // pred_region
          %p120 = scmp.lt.s32.totalorder %s12, 1
          %s121 = scalar_select %p120, %s12, 1
          %s122 = smul.addr %s121, 8
          %s123 = scalar_lea.vmem %s0, %s122
        $region24: #{tpu_custom_call.1} parent=19 // pred_fallthru
          _
      $region20: #{tpu_custom_call.1} parent=5 // pred_fallthru
        _
      %p124 = scmp.le.s32.totalorder 1, %s12
      %p125 = scmp.lt.s32.totalorder %s12, 3
      %p126 = pnand %p124, %p125
      %p127 = pneg %p126
      // Predicated region
      $region25: #{tpu_custom_call.1} parent=5 // pred_check
        _
      $region26: #{tpu_custom_call.1} parent=5 // pred_check_branch
        %129 = sbr.rel (%p126) target = $region28
      $region27: #{tpu_custom_call.1} parent=5 // pred_region
        %s130 = ssub.s32 %s12, 1
        // Predicated region
        $region29: #{tpu_custom_call.1} parent=27 // pred_check
          %p131 = pneg %p59
        $region30: #{tpu_custom_call.1} parent=27 // pred_check_branch
          %133 = sbr.rel (%p131) target = $region32
        $region31: #{tpu_custom_call.1} parent=27 // pred_region
          %134 = dma.done [#allocation3], 2048
        $region32: #{tpu_custom_call.1} parent=27 // pred_fallthru
          _
        %p135 = scmp.lt.s32.totalorder %s17, 1
        %s136 = scalar_select %p135, %s17, 1
        %s137 = smul.addr %s136, 8
        %s138 = scalar_lea.vmem %s0, %s137
        %p139 = pneg %p38
        %p140 = pneg %p35
        %p141 = pneg %p59
        %p142 = pneg %p56
        %p143 = pneg %p85
        %p144 = pneg %p82
        %s145 = sand.u32 %s72, 1
        %s146 = scalar_lea.sflag [#allocation4], %s145
        %s147 = sand.u32 %s72, 1
        %s148 = smul.addr %s147, 16
        %s149 = scalar_lea.vmem [#allocation5], %s148
        %p150 = scmp.lt.s32.totalorder %s17, 1
        %s151 = scalar_select %p150, %s17, 1
        %s152 = smul.addr %s151, 8
        %s153 = scalar_lea.vmem %s0, %s152
        %v154 = vld [vmem:[%s153] sm:$0xff]
        %v155 = vlaneseq
        %v156 = vand.u32 %v155, 127
        %157 = vset.pattern.permute.xlu0 0
        %158 = vperm.xlu0 %157, %v154
        %v159 = vpop.permute.xlu0 %158
        %vm160 = vcmp.eq.s32.totalorder %v159, %v156
        %v161 = vsel %vm160, 1, 0
        %v162 = vcvt.s32.f32 %v161
        %v163 = vld [vmem:[#allocation2] sm:$0xff]
        %v164 = vld [vmem:[#allocation2 + $0x8] sm:$0xff]
        %v165 = vld [vmem:[#allocation2 + $0x10] sm:$0xff]
        %v166 = vld [vmem:[#allocation2 + $0x18] sm:$0xff]
        %v167 = vld [vmem:[#allocation2 + $0x20] sm:$0xff]
        %v168 = vld [vmem:[#allocation2 + $0x28] sm:$0xff]
        %v169 = vld [vmem:[#allocation2 + $0x30] sm:$0xff]
        %v170 = vld [vmem:[#allocation2 + $0x38] sm:$0xff]
        %v171 = vld [vmem:[#allocation2 + $0x40] sm:$0xff]
        %v172 = vld [vmem:[#allocation2 + $0x48] sm:$0xff]
        %v173 = vld [vmem:[#allocation2 + $0x50] sm:$0xff]
        %v174 = vld [vmem:[#allocation2 + $0x58] sm:$0xff]
        %v175 = vld [vmem:[#allocation2 + $0x60] sm:$0xff]
        %v176 = vld [vmem:[#allocation2 + $0x68] sm:$0xff]
        %v177 = vld [vmem:[#allocation2 + $0x70] sm:$0xff]
        %v178 = vld [vmem:[#allocation2 + $0x78] sm:$0xff]
        %vm179 = vcmask 523264
        %v181 = vsel %vm179, %v162, 0
        %183 = vmatprep.subr.mxu0 %v164
        %184 = vmatpush1.msra.mxu0 %v163
        %185 = vmatprep.subr.mxu0 %v166
        %186 = vmatpush1.msra.mxu0 %v165
        %187 = vmatprep.subr.mxu0 %v168
        %188 = vmatpush1.msra.mxu0 %v167
        %189 = vmatprep.subr.mxu0 %v170
        %190 = vmatpush1.msra.mxu0 %v169
        %191 = vmatprep.subr.mxu0 %v172
        %192 = vmatpush1.msra.mxu0 %v171
        %193 = vmatprep.subr.mxu0 %v174
        %194 = vmatpush1.msra.mxu0 %v173
        %195 = vmatprep.subr.mxu0 %v176
        %196 = vmatpush1.msra.mxu0 %v175
        %197 = vmatprep.subr.mxu0 %v178
        %198 = vmatpush1.msra.mxu0 %v177
        %199 = vmatprep.subr.mxu0 0.0
        %200 = vmatpush1.msra.mxu0 0.0
        %201 = vmatprep.subr.mxu0 0.0
        %202 = vmatpush1.msra.mxu0 0.0
        %203 = vmatprep.subr.mxu0 0.0
        %204 = vmatpush1.msra.mxu0 0.0
        %205 = vmatprep.subr.mxu0 0.0
        %206 = vmatpush1.msra.mxu0 0.0
        %207 = vmatprep.subr.mxu0 0.0
        %208 = vmatpush1.msra.mxu0 0.0
        %209 = vmatprep.subr.mxu0 0.0
        %210 = vmatpush1.msra.mxu0 0.0
        %211 = vmatprep.subr.mxu0 0.0
        %212 = vmatpush1.msra.mxu0 0.0
        %213 = vmatprep.subr.mxu0 0.0
        %214 = vmatpush1.msra.mxu0 0.0
        %215 = vmatprep.subr.mxu0 0.0
        %216 = vmatpush1.msra.mxu0 0.0
        %217 = vmatprep.subr.mxu0 0.0
        %218 = vmatpush1.msra.mxu0 0.0
        %219 = vmatprep.subr.mxu0 0.0
        %220 = vmatpush1.msra.mxu0 0.0
        %221 = vmatprep.subr.mxu0 0.0
        %222 = vmatpush1.msra.mxu0 0.0
        %223 = vmatprep.subr.mxu0 0.0
        %224 = vmatpush1.msra.mxu0 0.0
        %225 = vmatprep.subr.mxu0 0.0
        %226 = vmatpush1.msra.mxu0 0.0
        %227 = vmatprep.subr.mxu0 0.0
        %228 = vmatpush1.msra.mxu0 0.0
        %229 = vmatprep.subr.mxu0 0.0
        %230 = vmatpush1.msra.mxu0 0.0
        %231 = vmatprep.subr.mxu0 0.0
        %232 = vmatpush1.msra.mxu0 0.0
        %233 = vmatprep.subr.mxu0 0.0
        %234 = vmatpush1.msra.mxu0 0.0
        %235 = vmatprep.subr.mxu0 0.0
        %236 = vmatpush1.msra.mxu0 0.0
        %237 = vmatprep.subr.mxu0 0.0
        %238 = vmatpush1.msra.mxu0 0.0
        %239 = vmatprep.subr.mxu0 0.0
        %240 = vmatpush1.msra.mxu0 0.0
        %241 = vmatprep.subr.mxu0 0.0
        %242 = vmatpush1.msra.mxu0 0.0
        %243 = vmatprep.subr.mxu0 0.0
        %244 = vmatpush1.msra.mxu0 0.0
        %245 = vmatprep.subr.mxu0 0.0
        %246 = vmatpush1.msra.mxu0 0.0
        %247 = vmatprep.mubr.f32.mxu0 0.0
        %248 = vmatmul.mubr.f32.gmra.mrb[0].mxu0 %v181
        %v249 = vpop.f32.mrb[0].mxu0
        %v250 = vadd.f32 0.0, %v249
        %v251 = vpop.f32.mrb[0].mxu0
        %v252 = vadd.f32 0.0, %v251
        %253 = vdwg.mxu0
        %254 = vst [vmem:[%s149] sm:$0xff] %v250
        %255 = vst [vmem:[%s149 + $0x8] sm:$0xff] %v252
        %s256 = sand.u32 %s72, 1
        %s257 = scalar_lea.sflag [#allocation4], %s256
        %s258 = sand.u32 %s72, 1
        %s259 = smul.addr %s258, 16
        %s260 = scalar_lea.vmem [#allocation5], %s259
        // Predicated region
        $region33: #{tpu_custom_call.1} parent=27 // pred_check
          %p261 = pneg %p82
        $region34: #{tpu_custom_call.1} parent=27 // pred_check_branch
          %263 = sbr.rel (%p261) target = $region36
        $region35: #{tpu_custom_call.1} parent=27 // pred_region
          %s265 = ssub.s32 256, 256
          %266 = vsyncadd %s257, %s265
          %s267 = smul.addr %s17, 2
          %s268 = smul.addr %s267, 128
          %s269 = scalar_lea.hbm %s2, %s268
          %s271 = sshll.u32 %s260, 4
          %s272 = int_to_ptr.vmem [resolvable:$true] %s271
          %274 = dma.vmem_to_hbm [thread:$0]  %s272, 256, %s269, %s257
        $region36: #{tpu_custom_call.1} parent=27 // pred_fallthru
          _
      $region28: #{tpu_custom_call.1} parent=5 // pred_fallthru
        _
      %p275 = scmp.le.s32.totalorder 2, %s12
      // Predicated region
      $region37: #{tpu_custom_call.1} parent=5 // pred_check
        %p276 = pneg %p275
      $region38: #{tpu_custom_call.1} parent=5 // pred_check_branch
        %278 = sbr.rel (%p276) target = $region40
      $region39: #{tpu_custom_call.1} parent=5 // pred_region
        %s279 = ssub.s32 %s12, 2
        // Predicated region
        $region41: #{tpu_custom_call.1} parent=39 // pred_check
          %p280 = pneg %p88
        $region42: #{tpu_custom_call.1} parent=39 // pred_check_branch
          %282 = sbr.rel (%p280) target = $region44
        $region43: #{tpu_custom_call.1} parent=39 // pred_region
          %s283 = sand.u32 %s73, 1
          %s284 = scalar_lea.sflag [#allocation4], %s283
          %s285 = sand.u32 %s73, 1
          %s286 = smul.addr %s285, 16
          %s287 = scalar_lea.vmem [#allocation5], %s286
          %288 = dma.done %s284, 256
        $region44: #{tpu_custom_call.1} parent=39 // pred_fallthru
          _
      $region40: #{tpu_custom_call.1} parent=5 // pred_fallthru
        _
    $region6: #{tpu_custom_call.1} parent=1 // loop_footer
      %s16 = sadd.s32 1, %s12
    $region7: #{tpu_custom_call.1} parent=1 // loop_footer_branch
      %11 = sbr.rel target = $region3
    $region8: #{tpu_custom_call.1} parent=1 // loop_exit
      _
    %289 = vsyncpa [#allocation3], 1
    %s290 = scalar_lea.sflag [#allocation3], 1
    %291 = vsyncpa %s290, 1
    %292 = vsyncpa [#allocation4], 1
    %s293 = scalar_lea.sflag [#allocation4], 1
    %294 = vsyncpa %s293, 1

</llo_original>
